<compile_context>
chip_gen: v7x
topology: tpu7x:2x2x1
jax: 0.10.0
libtpu: 0.0.40
codegen_flags: <defaults>
</compile_context>

<pallas_src>
import jax
import jax.numpy as jnp
from jax import lax
from jax.experimental import pallas as pl
from jax.experimental.pallas import tpu as pltpu


def _lsh_kernel(x_ref, w_ref, o_ref):
    # x_ref: (TB, D) block, w_ref: (1, D), o_ref: (1, TB)
    # Contract the feature axis of both operands on the MXU:
    #   (1, D) . (TB, D)^T -> (1, TB)   (lane-dense output row; only the tiny
    #   (1, D) operand is ever re-laid-out, never the big x block).
    o_ref[...] = lax.dot_general(
        w_ref[...],
        x_ref[...],
        dimension_numbers=(((1,), (1,)), ((), ())),
        preferred_element_type=jnp.float32,
    ).astype(o_ref.dtype)


def _tpu_vmem_capacity_bytes():
    """Physical VMEM per core; falls back to 128 MiB if the query fails."""
    try:
        info = pltpu.get_tpu_info()
        cap = getattr(info, "vmem_capacity_bytes", None)
        if cap:
            return int(cap)
    except Exception:
        pass
    return 128 << 20


def _choose_tile_b(B_padded, D, itemsize, *, target_block_bytes, min_steps):
    """Batch tile: multiple of 128 that divides B_padded, x-block close to
    target_block_bytes, and at least `min_steps` grid steps when possible."""
    row_bytes = max(1, D * itemsize)
    tile = max(128, (target_block_bytes // row_bytes) // 128 * 128)
    # Enforce a minimum number of grid steps (e.g. 2 on v7x for megacore).
    if min_steps > 1:
        tile = min(tile, max(128, (B_padded // min_steps) // 128 * 128))
    tile = min(tile, B_padded)
    tile = max(128, (tile // 128) * 128)
    while B_padded % tile != 0:  # make it divide B_padded (128 always does)
        tile -= 128
    return tile


def signed_random_projection_lsh(x, weights, *, tile_b=None):
    """x: (B, D) or (D,) float32, weights: (D,) float32 -> (B,) or scalar."""
    squeeze_batch = x.ndim == 1
    if squeeze_batch:
        x = x[None, :]
    B, D = x.shape
    assert weights.shape == (D,)
    itemsize = x.dtype.itemsize

    # Pad the batch up to a multiple of 128 so the tiled path covers every B.
    B_pad = ((B + 127) // 128) * 128
    if B_pad != B:
        x = jnp.pad(x, ((0, B_pad - B), (0, 0)))

    # Generation-aware tiling targets.
    vmem_cap = _tpu_vmem_capacity_bytes()
    small_vmem = vmem_cap <= (64 << 20)          # v7x-like: 64 MiB VMEM, 2 TCs
    target_block_bytes = (12 << 20) if small_vmem else (8 << 20)
    # On v7x feed both TensorCores whenever there are >= 2 row-tiles of work;
    # elsewhere a single big block is fine for small inputs.
    min_steps = 2 if (small_vmem and B_pad >= 256) else 1

    if tile_b is None:
        tile_b = _choose_tile_b(
            B_pad, D, itemsize,
            target_block_bytes=target_block_bytes, min_steps=min_steps)
    assert B_pad % tile_b == 0

    # VMEM budget: double-buffered x block + weights + output blocks + margin.
    block_bytes = tile_b * D * itemsize
    needed = 2 * block_bytes + 2 * D * itemsize + 2 * tile_b * itemsize + (1 << 20)
    hw_budget = (48 << 20) if small_vmem else (96 << 20)
    vmem_limit = int(min(hw_budget, max(32 << 20, needed)))

    w2d = weights.reshape(1, D).astype(x.dtype)

    cost = pl.CostEstimate(
        flops=2 * B_pad * D,
        transcendentals=0,
        bytes_accessed=(B_pad * D + D + B_pad) * itemsize,
    )

    out = pl.pallas_call(
        _lsh_kernel,
        out_shape=jax.ShapeDtypeStruct((1, B_pad), x.dtype),
        grid_spec=pltpu.PrefetchScalarGridSpec(
            num_scalar_prefetch=0,
            grid=(B_pad // tile_b,),
            in_specs=[
                pl.BlockSpec((tile_b, D), lambda i: (i, 0)),
                pl.BlockSpec((1, D), lambda i: (0, 0)),
            ],
            out_specs=pl.BlockSpec((1, tile_b), lambda i: (0, i)),
        ),
        compiler_params=pltpu.CompilerParams(
            dimension_semantics=("parallel",),
            vmem_limit_bytes=vmem_limit,
        ),
        cost_estimate=cost,
    )(x, w2d)

    out = out.reshape(B_pad)[:B]
    return out[0] if squeeze_batch else out


if __name__ == "__main__":
    # Module config (deterministic, in-script): input_length=256, dist='unif',
    # scale=1.0; batch of 1024 rows for the main check plus a ragged batch of
    # 300 rows to exercise the wrapper-side padding path.
    input_length = 256
    batch = 1024
    scale = 1.0

    key = jax.random.PRNGKey(0)
    k_x, k_w, k_r = jax.random.split(key, 3)

    x = jax.random.normal(k_x, (batch, input_length), dtype=jnp.float32)
    # torch.rand(input_length) * (2*scale) - scale  -> uniform in [-scale, scale]
    weights = jax.random.uniform(
        k_w, (input_length,), dtype=jnp.float32, minval=-scale, maxval=scale
    )

    out = signed_random_projection_lsh(x, weights)
    out = jax.block_until_ready(out)

    ref = x @ weights
    assert out.shape == (batch,)
    assert jnp.allclose(out, ref, atol=1e-3, rtol=1e-3)

    # Ragged batch (B % 128 != 0) exercises the padding path.
    x_ragged = jax.random.normal(k_r, (300, input_length), dtype=jnp.float32)
    out_ragged = jax.block_until_ready(
        signed_random_projection_lsh(x_ragged, weights))
    ref_ragged = x_ragged @ weights
    assert out_ragged.shape == (300,)
    assert jnp.allclose(out_ragged, ref_ragged, atol=1e-3, rtol=1e-3)

    print("KERNEL_OK")
</pallas_src>

<mosaic_0001>
module attributes {stable_mosaic.version = 11 : i64} {
  func.func @_lsh_kernel(%arg0: i32, %arg1: memref<1024x256xf32, #tpu.memory_space<vmem>>, %arg2: memref<1x256xf32, #tpu.memory_space<vmem>>, %arg3: memref<1x1024xf32, #tpu.memory_space<vmem>>) attributes {dimension_semantics = [#tpu.dimension_semantics<parallel>], iteration_bounds = array<i64: 1>, scalar_prefetch = 0 : i64, scratch_operands = 0 : i64, tpu.core_type = #tpu.core_type<tc>, window_params = [{transform_indices = @transform_0, window_bounds = array<i64: 1024, 256>}, {pipeline_mode = #tpu.pipeline_mode<synchronous>, transform_indices = @transform_1, window_bounds = array<i64: 1, 256>}, {transform_indices = @transform_2, window_bounds = array<i64: 1, 1024>}]} {
    %c0 = arith.constant 0 : index
    %c0_0 = arith.constant 0 : index
    %0 = vector.load %arg2[%c0, %c0_0] : memref<1x256xf32, #tpu.memory_space<vmem>>, vector<1x256xf32>
    %c0_1 = arith.constant 0 : index
    %c0_2 = arith.constant 0 : index
    %1 = vector.load %arg1[%c0_1, %c0_2] : memref<1024x256xf32, #tpu.memory_space<vmem>>, vector<1024x256xf32>
    %cst = arith.constant dense<0.000000e+00> : vector<1x1024xf32>
    %2 = tpu.matmul %0, %1, %cst {dimension_numbers = #tpu.dot_dimension_numbers<[1], [1], [0], [0], [0, 0, 1, 0], [], []>} : vector<1x256xf32>, vector<1024x256xf32>, vector<1x1024xf32> -> vector<1x1024xf32>
    %c0_3 = arith.constant 0 : index
    %c0_4 = arith.constant 0 : index
    %3 = vector.load %arg3[%c0_3, %c0_4] : memref<1x1024xf32, #tpu.memory_space<vmem>>, vector<1x1024xf32>
    tpu.vector_store %arg3[%c0_3, %c0_4], %2 {strides = array<i32>} : memref<1x1024xf32, #tpu.memory_space<vmem>>, vector<1x1024xf32>,
    return
  }
  func.func @transform_0(%arg0: i32) -> (i32, i32) {
    %c0_i32 = arith.constant 0 : i32
    %c0_i32_0 = arith.constant 0 : i32
    return %arg0, %c0_i32 : i32, i32
  }
  func.func @transform_1(%arg0: i32) -> (i32, i32) {
    %c0_i32 = arith.constant 0 : i32
    %c0_i32_0 = arith.constant 0 : i32
    %c0_i32_1 = arith.constant 0 : i32
    return %c0_i32, %c0_i32_0 : i32, i32
  }
  func.func @transform_2(%arg0: i32) -> (i32, i32) {
    %c0_i32 = arith.constant 0 : i32
    %c0_i32_0 = arith.constant 0 : i32
    return %c0_i32, %arg0 : i32, i32
  }
}

</mosaic_0001>

<llo_original>
// kernel: tpu_custom_call.1
$region0: #{tpu_custom_call.1}
  #allocation0 [shape = 'u32[]', space=smem, size = 0x4, offset = 0x4, fixed_abs, tag = 'smem constant byte address 0x4 - core index']
  #allocation1 [shape = 'u32[144,128]{1,0:T(1,128)}', space=vmem, size = 0x12000, scoped, tag = 'internal scratch']
  %s0 = inlined_call_operand.hbm [shape: f32[1024,256], index: 0, kind: input, shape index: {}]
  %s1 = inlined_call_operand.vmem [shape: f32[1,256], index: 1, kind: input, shape index: {}]
  %s2 = inlined_call_operand.hbm [shape: f32[1,1024], index: 2, kind: output, shape index: {}]
  %s3 = sld [smem:[#allocation0]]
  $region22: #{tpu_custom_call.1} parent=0
    _
  %s5 = ssub.s32 1, %s3
  %s6 = scalar_select 0, %s5, %s3
  $region1: #{tpu_custom_call.1} parent=0
    #allocation2 [shape = 'u8[1048576]{0}', space=vmem, size = 0x100000, scoped, tag = 'input window, operand 0, single buffered']
    #allocation3 [shape = 's32[1]{0}', space=sflag, size = 0x4, scoped, tag = 'scoped memory for tpu_custom_call.1']
    #allocation4 [shape = 's32[1]{0}', space=sflag, size = 0x4, scoped, tag = 'scoped memory for tpu_custom_call.1']
    #allocation5 [shape = 'u8[4096]{0}', space=vmem, size = 0x1000, scoped, tag = 'output window, operand 0, single buffered']
    %7 = vsyncpa [#allocation3], 0
    %8 = vsyncpa [#allocation4], 0
    // Predicated region
    $region2: #{tpu_custom_call.1} parent=1 // pred_check
      _
    $region3: #{tpu_custom_call.1} parent=1 // pred_check_branch
      %10 = sbr.rel (0) target = $region5
    $region4: #{tpu_custom_call.1} parent=1 // pred_region
      %s12 = ssub.s32 32768, 32768
      %13 = vsyncadd [#allocation3], %s12
      %s14 = sshll.u32 [#allocation2], 4
      %s15 = int_to_ptr.vmem [resolvable:$true] %s14
      %20 = dma.hbm_to_vmem [thread:$0]  %s0, 32768, %s15, [#allocation3], 256, 256, 16
    $region5: #{tpu_custom_call.1} parent=1 // pred_fallthru
      _
    // Predicated region
    $region6: #{tpu_custom_call.1} parent=1 // pred_check
      _
    $region7: #{tpu_custom_call.1} parent=1 // pred_check_branch
      %22 = sbr.rel (0) target = $region9
    $region8: #{tpu_custom_call.1} parent=1 // pred_region
      _
    $region9: #{tpu_custom_call.1} parent=1 // pred_fallthru
      _
    // Predicated region
    $region10: #{tpu_custom_call.1} parent=1 // pred_check
      _
    $region11: #{tpu_custom_call.1} parent=1 // pred_check_branch
      %24 = sbr.rel (0) target = $region13
    $region12: #{tpu_custom_call.1} parent=1 // pred_region
      %25 = dma.done [#allocation3], 32768
    $region13: #{tpu_custom_call.1} parent=1 // pred_fallthru
      _
    %v26 = vld [vmem:[%s1] sm:$0x3]
    %v27 = vld [vmem:[#allocation2] sm:$0xff]
    %v28 = vld [vmem:[#allocation2 + $0x8] sm:$0xff]
    %v29 = vld [vmem:[#allocation2 + $0x10] sm:$0xff]
    %v30 = vld [vmem:[#allocation2 + $0x18] sm:$0xff]
    %v31 = vld [vmem:[#allocation2 + $0x20] sm:$0xff]
    %v32 = vld [vmem:[#allocation2 + $0x28] sm:$0xff]
    %v33 = vld [vmem:[#allocation2 + $0x30] sm:$0xff]
    %v34 = vld [vmem:[#allocation2 + $0x38] sm:$0xff]
    %v35 = vld [vmem:[#allocation2 + $0x40] sm:$0xff]
    %v36 = vld [vmem:[#allocation2 + $0x48] sm:$0xff]
    %v37 = vld [vmem:[#allocation2 + $0x50] sm:$0xff]
    %v38 = vld [vmem:[#allocation2 + $0x58] sm:$0xff]
    %v39 = vld [vmem:[#allocation2 + $0x60] sm:$0xff]
    %v40 = vld [vmem:[#allocation2 + $0x68] sm:$0xff]
    %v41 = vld [vmem:[#allocation2 + $0x70] sm:$0xff]
    %v42 = vld [vmem:[#allocation2 + $0x78] sm:$0xff]
    %v43 = vld [vmem:[#allocation2 + $0x80] sm:$0xff]
    %v44 = vld [vmem:[#allocation2 + $0x88] sm:$0xff]
    %v45 = vld [vmem:[#allocation2 + $0x90] sm:$0xff]
    %v46 = vld [vmem:[#allocation2 + $0x98] sm:$0xff]
    %v47 = vld [vmem:[#allocation2 + $0xa0] sm:$0xff]
    %v48 = vld [vmem:[#allocation2 + $0xa8] sm:$0xff]
    %v49 = vld [vmem:[#allocation2 + $0xb0] sm:$0xff]
    %v50 = vld [vmem:[#allocation2 + $0xb8] sm:$0xff]
    %v51 = vld [vmem:[#allocation2 + $0xc0] sm:$0xff]
    %v52 = vld [vmem:[#allocation2 + $0xc8] sm:$0xff]
    %v53 = vld [vmem:[#allocation2 + $0xd0] sm:$0xff]
    %v54 = vld [vmem:[#allocation2 + $0xd8] sm:$0xff]
    %v55 = vld [vmem:[#allocation2 + $0xe0] sm:$0xff]
    %v56 = vld [vmem:[#allocation2 + $0xe8] sm:$0xff]
    %v57 = vld [vmem:[#allocation2 + $0xf0] sm:$0xff]
    %v58 = vld [vmem:[#allocation2 + $0xf8] sm:$0xff]
    %v59 = vld [vmem:[#allocation2 + $0x100] sm:$0xff]
    %v60 = vld [vmem:[#allocation2 + $0x108] sm:$0xff]
    %v61 = vld [vmem:[#allocation2 + $0x110] sm:$0xff]
    %v62 = vld [vmem:[#allocation2 + $0x118] sm:$0xff]
    %v63 = vld [vmem:[#allocation2 + $0x120] sm:$0xff]
    %v64 = vld [vmem:[#allocation2 + $0x128] sm:$0xff]
    %v65 = vld [vmem:[#allocation2 + $0x130] sm:$0xff]
    %v66 = vld [vmem:[#allocation2 + $0x138] sm:$0xff]
    %v67 = vld [vmem:[#allocation2 + $0x140] sm:$0xff]
    %v68 = vld [vmem:[#allocation2 + $0x148] sm:$0xff]
    %v69 = vld [vmem:[#allocation2 + $0x150] sm:$0xff]
    %v70 = vld [vmem:[#allocation2 + $0x158] sm:$0xff]
    %v71 = vld [vmem:[#allocation2 + $0x160] sm:$0xff]
    %v72 = vld [vmem:[#allocation2 + $0x168] sm:$0xff]
    %v73 = vld [vmem:[#allocation2 + $0x170] sm:$0xff]
    %v74 = vld [vmem:[#allocation2 + $0x178] sm:$0xff]
    %v75 = vld [vmem:[#allocation2 + $0x180] sm:$0xff]
    %v76 = vld [vmem:[#allocation2 + $0x188] sm:$0xff]
    %v77 = vld [vmem:[#allocation2 + $0x190] sm:$0xff]
    %v78 = vld [vmem:[#allocation2 + $0x198] sm:$0xff]
    %v79 = vld [vmem:[#allocation2 + $0x1a0] sm:$0xff]
    %v80 = vld [vmem:[#allocation2 + $0x1a8] sm:$0xff]
    %v81 = vld [vmem:[#allocation2 + $0x1b0] sm:$0xff]
    %v82 = vld [vmem:[#allocation2 + $0x1b8] sm:$0xff]
    %v83 = vld [vmem:[#allocation2 + $0x1c0] sm:$0xff]
    %v84 = vld [vmem:[#allocation2 + $0x1c8] sm:$0xff]
    %v85 = vld [vmem:[#allocation2 + $0x1d0] sm:$0xff]
    %v86 = vld [vmem:[#allocation2 + $0x1d8] sm:$0xff]
    %v87 = vld [vmem:[#allocation2 + $0x1e0] sm:$0xff]
    %v88 = vld [vmem:[#allocation2 + $0x1e8] sm:$0xff]
    %v89 = vld [vmem:[#allocation2 + $0x1f0] sm:$0xff]
    %v90 = vld [vmem:[#allocation2 + $0x1f8] sm:$0xff]
    %v91 = vld [vmem:[#allocation2 + $0x200] sm:$0xff]
    %v92 = vld [vmem:[#allocation2 + $0x208] sm:$0xff]
    %v93 = vld [vmem:[#allocation2 + $0x210] sm:$0xff]
    %v94 = vld [vmem:[#allocation2 + $0x218] sm:$0xff]
    %v95 = vld [vmem:[#allocation2 + $0x220] sm:$0xff]
    %v96 = vld [vmem:[#allocation2 + $0x228] sm:$0xff]
    %v97 = vld [vmem:[#allocation2 + $0x230] sm:$0xff]
    %v98 = vld [vmem:[#allocation2 + $0x238] sm:$0xff]
    %v99 = vld [vmem:[#allocation2 + $0x240] sm:$0xff]
    %v100 = vld [vmem:[#allocation2 + $0x248] sm:$0xff]
    %v101 = vld [vmem:[#allocation2 + $0x250] sm:$0xff]
    %v102 = vld [vmem:[#allocation2 + $0x258] sm:$0xff]
    %v103 = vld [vmem:[#allocation2 + $0x260] sm:$0xff]
    %v104 = vld [vmem:[#allocation2 + $0x268] sm:$0xff]
    %v105 = vld [vmem:[#allocation2 + $0x270] sm:$0xff]
    %v106 = vld [vmem:[#allocation2 + $0x278] sm:$0xff]
    %v107 = vld [vmem:[#allocation2 + $0x280] sm:$0xff]
    %v108 = vld [vmem:[#allocation2 + $0x288] sm:$0xff]
    %v109 = vld [vmem:[#allocation2 + $0x290] sm:$0xff]
    %v110 = vld [vmem:[#allocation2 + $0x298] sm:$0xff]
    %v111 = vld [vmem:[#allocation2 + $0x2a0] sm:$0xff]
    %v112 = vld [vmem:[#allocation2 + $0x2a8] sm:$0xff]
    %v113 = vld [vmem:[#allocation2 + $0x2b0] sm:$0xff]
    %v114 = vld [vmem:[#allocation2 + $0x2b8] sm:$0xff]
    %v115 = vld [vmem:[#allocation2 + $0x2c0] sm:$0xff]
    %v116 = vld [vmem:[#allocation2 + $0x2c8] sm:$0xff]
    %v117 = vld [vmem:[#allocation2 + $0x2d0] sm:$0xff]
    %v118 = vld [vmem:[#allocation2 + $0x2d8] sm:$0xff]
    %v119 = vld [vmem:[#allocation2 + $0x2e0] sm:$0xff]
    %v120 = vld [vmem:[#allocation2 + $0x2e8] sm:$0xff]
    %v121 = vld [vmem:[#allocation2 + $0x2f0] sm:$0xff]
    %v122 = vld [vmem:[#allocation2 + $0x2f8] sm:$0xff]
    %v123 = vld [vmem:[#allocation2 + $0x300] sm:$0xff]
    %v124 = vld [vmem:[#allocation2 + $0x308] sm:$0xff]
    %v125 = vld [vmem:[#allocation2 + $0x310] sm:$0xff]
    %v126 = vld [vmem:[#allocation2 + $0x318] sm:$0xff]
    %v127 = vld [vmem:[#allocation2 + $0x320] sm:$0xff]
    %v128 = vld [vmem:[#allocation2 + $0x328] sm:$0xff]
    %v129 = vld [vmem:[#allocation2 + $0x330] sm:$0xff]
    %v130 = vld [vmem:[#allocation2 + $0x338] sm:$0xff]
    %v131 = vld [vmem:[#allocation2 + $0x340] sm:$0xff]
    %v132 = vld [vmem:[#allocation2 + $0x348] sm:$0xff]
    %v133 = vld [vmem:[#allocation2 + $0x350] sm:$0xff]
    %v134 = vld [vmem:[#allocation2 + $0x358] sm:$0xff]
    %v135 = vld [vmem:[#allocation2 + $0x360] sm:$0xff]
    %v136 = vld [vmem:[#allocation2 + $0x368] sm:$0xff]
    %v137 = vld [vmem:[#allocation2 + $0x370] sm:$0xff]
    %v138 = vld [vmem:[#allocation2 + $0x378] sm:$0xff]
    %v139 = vld [vmem:[#allocation2 + $0x380] sm:$0xff]
    %v140 = vld [vmem:[#allocation2 + $0x388] sm:$0xff]
    %v141 = vld [vmem:[#allocation2 + $0x390] sm:$0xff]
    %v142 = vld [vmem:[#allocation2 + $0x398] sm:$0xff]
    %v143 = vld [vmem:[#allocation2 + $0x3a0] sm:$0xff]
    %v144 = vld [vmem:[#allocation2 + $0x3a8] sm:$0xff]
    %v145 = vld [vmem:[#allocation2 + $0x3b0] sm:$0xff]
    %v146 = vld [vmem:[#allocation2 + $0x3b8] sm:$0xff]
    %v147 = vld [vmem:[#allocation2 + $0x3c0] sm:$0xff]
    %v148 = vld [vmem:[#allocation2 + $0x3c8] sm:$0xff]
    %v149 = vld [vmem:[#allocation2 + $0x3d0] sm:$0xff]
    %v150 = vld [vmem:[#allocation2 + $0x3d8] sm:$0xff]
    %v151 = vld [vmem:[#allocation2 + $0x3e0] sm:$0xff]
    %v152 = vld [vmem:[#allocation2 + $0x3e8] sm:$0xff]
    %v153 = vld [vmem:[#allocation2 + $0x3f0] sm:$0xff]
    %v154 = vld [vmem:[#allocation2 + $0x3f8] sm:$0xff]
    %v155 = vld [vmem:[#allocation2 + $0x400] sm:$0xff]
    %v156 = vld [vmem:[#allocation2 + $0x408] sm:$0xff]
    %v157 = vld [vmem:[#allocation2 + $0x410] sm:$0xff]
    %v158 = vld [vmem:[#allocation2 + $0x418] sm:$0xff]
    %v159 = vld [vmem:[#allocation2 + $0x420] sm:$0xff]
    %v160 = vld [vmem:[#allocation2 + $0x428] sm:$0xff]
    %v161 = vld [vmem:[#allocation2 + $0x430] sm:$0xff]
    %v162 = vld [vmem:[#allocation2 + $0x438] sm:$0xff]
    %v163 = vld [vmem:[#allocation2 + $0x440] sm:$0xff]
    %v164 = vld [vmem:[#allocation2 + $0x448] sm:$0xff]
    %v165 = vld [vmem:[#allocation2 + $0x450] sm:$0xff]
    %v166 = vld [vmem:[#allocation2 + $0x458] sm:$0xff]
    %v167 = vld [vmem:[#allocation2 + $0x460] sm:$0xff]
    %v168 = vld [vmem:[#allocation2 + $0x468] sm:$0xff]
    %v169 = vld [vmem:[#allocation2 + $0x470] sm:$0xff]
    %v170 = vld [vmem:[#allocation2 + $0x478] sm:$0xff]
    %v171 = vld [vmem:[#allocation2 + $0x480] sm:$0xff]
    %v172 = vld [vmem:[#allocation2 + $0x488] sm:$0xff]
    %v173 = vld [vmem:[#allocation2 + $0x490] sm:$0xff]
    %v174 = vld [vmem:[#allocation2 + $0x498] sm:$0xff]
    %v175 = vld [vmem:[#allocation2 + $0x4a0] sm:$0xff]
    %v176 = vld [vmem:[#allocation2 + $0x4a8] sm:$0xff]
    %v177 = vld [vmem:[#allocation2 + $0x4b0] sm:$0xff]
    %v178 = vld [vmem:[#allocation2 + $0x4b8] sm:$0xff]
    %v179 = vld [vmem:[#allocation2 + $0x4c0] sm:$0xff]
    %v180 = vld [vmem:[#allocation2 + $0x4c8] sm:$0xff]
    %v181 = vld [vmem:[#allocation2 + $0x4d0] sm:$0xff]
    %v182 = vld [vmem:[#allocation2 + $0x4d8] sm:$0xff]
    %v183 = vld [vmem:[#allocation2 + $0x4e0] sm:$0xff]
    %v184 = vld [vmem:[#allocation2 + $0x4e8] sm:$0xff]
    %v185 = vld [vmem:[#allocation2 + $0x4f0] sm:$0xff]
    %v186 = vld [vmem:[#allocation2 + $0x4f8] sm:$0xff]
    %v187 = vld [vmem:[#allocation2 + $0x500] sm:$0xff]
    %v188 = vld [vmem:[#allocation2 + $0x508] sm:$0xff]
    %v189 = vld [vmem:[#allocation2 + $0x510] sm:$0xff]
    %v190 = vld [vmem:[#allocation2 + $0x518] sm:$0xff]
    %v191 = vld [vmem:[#allocation2 + $0x520] sm:$0xff]
    %v192 = vld [vmem:[#allocation2 + $0x528] sm:$0xff]
    %v193 = vld [vmem:[#allocation2 + $0x530] sm:$0xff]
    %v194 = vld [vmem:[#allocation2 + $0x538] sm:$0xff]
    %v195 = vld [vmem:[#allocation2 + $0x540] sm:$0xff]
    %v196 = vld [vmem:[#allocation2 + $0x548] sm:$0xff]
    %v197 = vld [vmem:[#allocation2 + $0x550] sm:$0xff]
    %v198 = vld [vmem:[#allocation2 + $0x558] sm:$0xff]
    %v199 = vld [vmem:[#allocation2 + $0x560] sm:$0xff]
    %v200 = vld [vmem:[#allocation2 + $0x568] sm:$0xff]
    %v201 = vld [vmem:[#allocation2 + $0x570] sm:$0xff]
    %v202 = vld [vmem:[#allocation2 + $0x578] sm:$0xff]
    %v203 = vld [vmem:[#allocation2 + $0x580] sm:$0xff]
    %v204 = vld [vmem:[#allocation2 + $0x588] sm:$0xff]
    %v205 = vld [vmem:[#allocation2 + $0x590] sm:$0xff]
    %v206 = vld [vmem:[#allocation2 + $0x598] sm:$0xff]
    %v207 = vld [vmem:[#allocation2 + $0x5a0] sm:$0xff]
    %v208 = vld [vmem:[#allocation2 + $0x5a8] sm:$0xff]
    %v209 = vld [vmem:[#allocation2 + $0x5b0] sm:$0xff]
    %v210 = vld [vmem:[#allocation2 + $0x5b8] sm:$0xff]
    %v211 = vld [vmem:[#allocation2 + $0x5c0] sm:$0xff]
    %v212 = vld [vmem:[#allocation2 + $0x5c8] sm:$0xff]
    %v213 = vld [vmem:[#allocation2 + $0x5d0] sm:$0xff]
    %v214 = vld [vmem:[#allocation2 + $0x5d8] sm:$0xff]
    %v215 = vld [vmem:[#allocation2 + $0x5e0] sm:$0xff]
    %v216 = vld [vmem:[#allocation2 + $0x5e8] sm:$0xff]
    %v217 = vld [vmem:[#allocation2 + $0x5f0] sm:$0xff]
    %v218 = vld [vmem:[#allocation2 + $0x5f8] sm:$0xff]
    %v219 = vld [vmem:[#allocation2 + $0x600] sm:$0xff]
    %v220 = vld [vmem:[#allocation2 + $0x608] sm:$0xff]
    %v221 = vld [vmem:[#allocation2 + $0x610] sm:$0xff]
    %v222 = vld [vmem:[#allocation2 + $0x618] sm:$0xff]
    %v223 = vld [vmem:[#allocation2 + $0x620] sm:$0xff]
    %v224 = vld [vmem:[#allocation2 + $0x628] sm:$0xff]
    %v225 = vld [vmem:[#allocation2 + $0x630] sm:$0xff]
    %v226 = vld [vmem:[#allocation2 + $0x638] sm:$0xff]
    %v227 = vld [vmem:[#allocation2 + $0x640] sm:$0xff]
    %v228 = vld [vmem:[#allocation2 + $0x648] sm:$0xff]
    %v229 = vld [vmem:[#allocation2 + $0x650] sm:$0xff]
    %v230 = vld [vmem:[#allocation2 + $0x658] sm:$0xff]
    %v231 = vld [vmem:[#allocation2 + $0x660] sm:$0xff]
    %v232 = vld [vmem:[#allocation2 + $0x668] sm:$0xff]
    %v233 = vld [vmem:[#allocation2 + $0x670] sm:$0xff]
    %v234 = vld [vmem:[#allocation2 + $0x678] sm:$0xff]
    %v235 = vld [vmem:[#allocation2 + $0x680] sm:$0xff]
    %v236 = vld [vmem:[#allocation2 + $0x688] sm:$0xff]
    %v237 = vld [vmem:[#allocation2 + $0x690] sm:$0xff]
    %v238 = vld [vmem:[#allocation2 + $0x698] sm:$0xff]
    %v239 = vld [vmem:[#allocation2 + $0x6a0] sm:$0xff]
    %v240 = vld [vmem:[#allocation2 + $0x6a8] sm:$0xff]
    %v241 = vld [vmem:[#allocation2 + $0x6b0] sm:$0xff]
    %v242 = vld [vmem:[#allocation2 + $0x6b8] sm:$0xff]
    %v243 = vld [vmem:[#allocation2 + $0x6c0] sm:$0xff]
    %v244 = vld [vmem:[#allocation2 + $0x6c8] sm:$0xff]
    %v245 = vld [vmem:[#allocation2 + $0x6d0] sm:$0xff]
    %v246 = vld [vmem:[#allocation2 + $0x6d8] sm:$0xff]
    %v247 = vld [vmem:[#allocation2 + $0x6e0] sm:$0xff]
    %v248 = vld [vmem:[#allocation2 + $0x6e8] sm:$0xff]
    %v249 = vld [vmem:[#allocation2 + $0x6f0] sm:$0xff]
    %v250 = vld [vmem:[#allocation2 + $0x6f8] sm:$0xff]
    %v251 = vld [vmem:[#allocation2 + $0x700] sm:$0xff]
    %v252 = vld [vmem:[#allocation2 + $0x708] sm:$0xff]
    %v253 = vld [vmem:[#allocation2 + $0x710] sm:$0xff]
    %v254 = vld [vmem:[#allocation2 + $0x718] sm:$0xff]
    %v255 = vld [vmem:[#allocation2 + $0x720] sm:$0xff]
    %v256 = vld [vmem:[#allocation2 + $0x728] sm:$0xff]
    %v257 = vld [vmem:[#allocation2 + $0x730] sm:$0xff]
    %v258 = vld [vmem:[#allocation2 + $0x738] sm:$0xff]
    %v259 = vld [vmem:[#allocation2 + $0x740] sm:$0xff]
    %v260 = vld [vmem:[#allocation2 + $0x748] sm:$0xff]
    %v261 = vld [vmem:[#allocation2 + $0x750] sm:$0xff]
    %v262 = vld [vmem:[#allocation2 + $0x758] sm:$0xff]
    %v263 = vld [vmem:[#allocation2 + $0x760] sm:$0xff]
    %v264 = vld [vmem:[#allocation2 + $0x768] sm:$0xff]
    %v265 = vld [vmem:[#allocation2 + $0x770] sm:$0xff]
    %v266 = vld [vmem:[#allocation2 + $0x778] sm:$0xff]
    %v267 = vld [vmem:[#allocation2 + $0x780] sm:$0xff]
    %v268 = vld [vmem:[#allocation2 + $0x788] sm:$0xff]
    %v269 = vld [vmem:[#allocation2 + $0x790] sm:$0xff]
    %v270 = vld [vmem:[#allocation2 + $0x798] sm:$0xff]
    %v271 = vld [vmem:[#allocation2 + $0x7a0] sm:$0xff]
    %v272 = vld [vmem:[#allocation2 + $0x7a8] sm:$0xff]
    %v273 = vld [vmem:[#allocation2 + $0x7b0] sm:$0xff]
    %v274 = vld [vmem:[#allocation2 + $0x7b8] sm:$0xff]
    %v275 = vld [vmem:[#allocation2 + $0x7c0] sm:$0xff]
    %v276 = vld [vmem:[#allocation2 + $0x7c8] sm:$0xff]
    %v277 = vld [vmem:[#allocation2 + $0x7d0] sm:$0xff]
    %v278 = vld [vmem:[#allocation2 + $0x7d8] sm:$0xff]
    %v279 = vld [vmem:[#allocation2 + $0x7e0] sm:$0xff]
    %v280 = vld [vmem:[#allocation2 + $0x7e8] sm:$0xff]
    %v281 = vld [vmem:[#allocation2 + $0x7f0] sm:$0xff]
    %v282 = vld [vmem:[#allocation2 + $0x7f8] sm:$0xff]
    %v284 = vlaneseq
    %v285 = vshrl.u32 %v284, 7
    %v286 = vsub.s32 0, %v285
    %v287 = vrot.slane %v26, %v286
    %v288 = vlaneseq
    %v289 = vshrl.u32 %v288, 7
    %v290 = vsub.s32 1, %v289
    %v291 = vrot.slane %v26, %v290
    %294 = vmatprep.subr.mxu0 %v28
    %295 = vmatpush1.xpose.msra.mxu0 %v27
    %296 = vmatprep.subr.mxu0 %v30
    %297 = vmatpush1.xpose.msra.mxu0 %v29
    %298 = vmatprep.subr.mxu0 %v32
    %299 = vmatpush1.xpose.msra.mxu0 %v31
    %300 = vmatprep.subr.mxu0 %v34
    %301 = vmatpush1.xpose.msra.mxu0 %v33
    %302 = vmatprep.subr.mxu0 %v36
    %303 = vmatpush1.xpose.msra.mxu0 %v35
    %304 = vmatprep.subr.mxu0 %v38
    %305 = vmatpush1.xpose.msra.mxu0 %v37
    %306 = vmatprep.subr.mxu0 %v40
    %307 = vmatpush1.xpose.msra.mxu0 %v39
    %308 = vmatprep.subr.mxu0 %v42
    %309 = vmatpush1.xpose.msra.mxu0 %v41
    %310 = vmatprep.subr.mxu0 %v44
    %311 = vmatpush1.xpose.msra.mxu0 %v43
    %312 = vmatprep.subr.mxu0 %v46
    %313 = vmatpush1.xpose.msra.mxu0 %v45
    %314 = vmatprep.subr.mxu0 %v48
    %315 = vmatpush1.xpose.msra.mxu0 %v47
    %316 = vmatprep.subr.mxu0 %v50
    %317 = vmatpush1.xpose.msra.mxu0 %v49
    %318 = vmatprep.subr.mxu0 %v52
    %319 = vmatpush1.xpose.msra.mxu0 %v51
    %320 = vmatprep.subr.mxu0 %v54
    %321 = vmatpush1.xpose.msra.mxu0 %v53
    %322 = vmatprep.subr.mxu0 %v56
    %323 = vmatpush1.xpose.msra.mxu0 %v55
    %324 = vmatprep.subr.mxu0 %v58
    %325 = vmatpush1.xpose.msra.mxu0 %v57
    %326 = vmatprep.subr.mxu0 %v60
    %327 = vmatpush1.xpose.msra.mxu0 %v59
    %328 = vmatprep.subr.mxu0 %v62
    %329 = vmatpush1.xpose.msra.mxu0 %v61
    %330 = vmatprep.subr.mxu0 %v64
    %331 = vmatpush1.xpose.msra.mxu0 %v63
    %332 = vmatprep.subr.mxu0 %v66
    %333 = vmatpush1.xpose.msra.mxu0 %v65
    %334 = vmatprep.subr.mxu0 %v68
    %335 = vmatpush1.xpose.msra.mxu0 %v67
    %336 = vmatprep.subr.mxu0 %v70
    %337 = vmatpush1.xpose.msra.mxu0 %v69
    %338 = vmatprep.subr.mxu0 %v72
    %339 = vmatpush1.xpose.msra.mxu0 %v71
    %340 = vmatprep.subr.mxu0 %v74
    %341 = vmatpush1.xpose.msra.mxu0 %v73
    %342 = vmatprep.subr.mxu0 %v76
    %343 = vmatpush1.xpose.msra.mxu0 %v75
    %344 = vmatprep.subr.mxu0 %v78
    %345 = vmatpush1.xpose.msra.mxu0 %v77
    %346 = vmatprep.subr.mxu0 %v80
    %347 = vmatpush1.xpose.msra.mxu0 %v79
    %348 = vmatprep.subr.mxu0 %v82
    %349 = vmatpush1.xpose.msra.mxu0 %v81
    %350 = vmatprep.subr.mxu0 %v84
    %351 = vmatpush1.xpose.msra.mxu0 %v83
    %352 = vmatprep.subr.mxu0 %v86
    %353 = vmatpush1.xpose.msra.mxu0 %v85
    %354 = vmatprep.subr.mxu0 %v88
    %355 = vmatpush1.xpose.msra.mxu0 %v87
    %356 = vmatprep.subr.mxu0 %v90
    %357 = vmatpush1.xpose.msra.mxu0 %v89
    %358 = vmatprep.mubr.f32.mxu0 %v291
    %359 = vmatmul.mubr.f32.gmra.mrb[0].mxu0 %v287
    %v360 = vpop.f32.mrb[0].mxu0
    %v361 = vadd.f32 0.0, %v360
    %v362 = vpop.f32.mrb[0].mxu0
    %v363 = vadd.f32 0.0, %v362
    %364 = vdwg.mxu0
    %365 = vmatprep.subr.mxu0 %v92
    %366 = vmatpush1.xpose.msra.mxu0 %v91
    %367 = vmatprep.subr.mxu0 %v94
    %368 = vmatpush1.xpose.msra.mxu0 %v93
    %369 = vmatprep.subr.mxu0 %v96
    %370 = vmatpush1.xpose.msra.mxu0 %v95
    %371 = vmatprep.subr.mxu0 %v98
    %372 = vmatpush1.xpose.msra.mxu0 %v97
    %373 = vmatprep.subr.mxu0 %v100
    %374 = vmatpush1.xpose.msra.mxu0 %v99
    %375 = vmatprep.subr.mxu0 %v102
    %376 = vmatpush1.xpose.msra.mxu0 %v101
    %377 = vmatprep.subr.mxu0 %v104
    %378 = vmatpush1.xpose.msra.mxu0 %v103
    %379 = vmatprep.subr.mxu0 %v106
    %380 = vmatpush1.xpose.msra.mxu0 %v105
    %381 = vmatprep.subr.mxu0 %v108
    %382 = vmatpush1.xpose.msra.mxu0 %v107
    %383 = vmatprep.subr.mxu0 %v110
    %384 = vmatpush1.xpose.msra.mxu0 %v109
    %385 = vmatprep.subr.mxu0 %v112
    %386 = vmatpush1.xpose.msra.mxu0 %v111
    %387 = vmatprep.subr.mxu0 %v114
    %388 = vmatpush1.xpose.msra.mxu0 %v113
    %389 = vmatprep.subr.mxu0 %v116
    %390 = vmatpush1.xpose.msra.mxu0 %v115
    %391 = vmatprep.subr.mxu0 %v118
    %392 = vmatpush1.xpose.msra.mxu0 %v117
    %393 = vmatprep.subr.mxu0 %v120
    %394 = vmatpush1.xpose.msra.mxu0 %v119
    %395 = vmatprep.subr.mxu0 %v122
    %396 = vmatpush1.xpose.msra.mxu0 %v121
    %397 = vmatprep.subr.mxu0 %v124
    %398 = vmatpush1.xpose.msra.mxu0 %v123
    %399 = vmatprep.subr.mxu0 %v126
    %400 = vmatpush1.xpose.msra.mxu0 %v125
    %401 = vmatprep.subr.mxu0 %v128
    %402 = vmatpush1.xpose.msra.mxu0 %v127
    %403 = vmatprep.subr.mxu0 %v130
    %404 = vmatpush1.xpose.msra.mxu0 %v129
    %405 = vmatprep.subr.mxu0 %v132
    %406 = vmatpush1.xpose.msra.mxu0 %v131
    %407 = vmatprep.subr.mxu0 %v134
    %408 = vmatpush1.xpose.msra.mxu0 %v133
    %409 = vmatprep.subr.mxu0 %v136
    %410 = vmatpush1.xpose.msra.mxu0 %v135
    %411 = vmatprep.subr.mxu0 %v138
    %412 = vmatpush1.xpose.msra.mxu0 %v137
    %413 = vmatprep.subr.mxu0 %v140
    %414 = vmatpush1.xpose.msra.mxu0 %v139
    %415 = vmatprep.subr.mxu0 %v142
    %416 = vmatpush1.xpose.msra.mxu0 %v141
    %417 = vmatprep.subr.mxu0 %v144
    %418 = vmatpush1.xpose.msra.mxu0 %v143
    %419 = vmatprep.subr.mxu0 %v146
    %420 = vmatpush1.xpose.msra.mxu0 %v145
    %421 = vmatprep.subr.mxu0 %v148
    %422 = vmatpush1.xpose.msra.mxu0 %v147
    %423 = vmatprep.subr.mxu0 %v150
    %424 = vmatpush1.xpose.msra.mxu0 %v149
    %425 = vmatprep.subr.mxu0 %v152
    %426 = vmatpush1.xpose.msra.mxu0 %v151
    %427 = vmatprep.subr.mxu0 %v154
    %428 = vmatpush1.xpose.msra.mxu0 %v153
    %429 = vmatprep.mubr.f32.mxu0 %v291
    %430 = vmatmul.mubr.f32.gmra.mrb[0].mxu0 %v287
    %v431 = vpop.f32.mrb[0].mxu0
    %v432 = vadd.f32 0.0, %v431
    %v433 = vpop.f32.mrb[0].mxu0
    %v434 = vadd.f32 0.0, %v433
    %435 = vdwg.mxu0
    %436 = vmatprep.subr.mxu0 %v156
    %437 = vmatpush1.xpose.msra.mxu0 %v155
    %438 = vmatprep.subr.mxu0 %v158
    %439 = vmatpush1.xpose.msra.mxu0 %v157
    %440 = vmatprep.subr.mxu0 %v160
    %441 = vmatpush1.xpose.msra.mxu0 %v159
    %442 = vmatprep.subr.mxu0 %v162
    %443 = vmatpush1.xpose.msra.mxu0 %v161
    %444 = vmatprep.subr.mxu0 %v164
    %445 = vmatpush1.xpose.msra.mxu0 %v163
    %446 = vmatprep.subr.mxu0 %v166
    %447 = vmatpush1.xpose.msra.mxu0 %v165
    %448 = vmatprep.subr.mxu0 %v168
    %449 = vmatpush1.xpose.msra.mxu0 %v167
    %450 = vmatprep.subr.mxu0 %v170
    %451 = vmatpush1.xpose.msra.mxu0 %v169
    %452 = vmatprep.subr.mxu0 %v172
    %453 = vmatpush1.xpose.msra.mxu0 %v171
    %454 = vmatprep.subr.mxu0 %v174
    %455 = vmatpush1.xpose.msra.mxu0 %v173
    %456 = vmatprep.subr.mxu0 %v176
    %457 = vmatpush1.xpose.msra.mxu0 %v175
    %458 = vmatprep.subr.mxu0 %v178
    %459 = vmatpush1.xpose.msra.mxu0 %v177
    %460 = vmatprep.subr.mxu0 %v180
    %461 = vmatpush1.xpose.msra.mxu0 %v179
    %462 = vmatprep.subr.mxu0 %v182
    %463 = vmatpush1.xpose.msra.mxu0 %v181
    %464 = vmatprep.subr.mxu0 %v184
    %465 = vmatpush1.xpose.msra.mxu0 %v183
    %466 = vmatprep.subr.mxu0 %v186
    %467 = vmatpush1.xpose.msra.mxu0 %v185
    %468 = vmatprep.subr.mxu0 %v188
    %469 = vmatpush1.xpose.msra.mxu0 %v187
    %470 = vmatprep.subr.mxu0 %v190
    %471 = vmatpush1.xpose.msra.mxu0 %v189
    %472 = vmatprep.subr.mxu0 %v192
    %473 = vmatpush1.xpose.msra.mxu0 %v191
    %474 = vmatprep.subr.mxu0 %v194
    %475 = vmatpush1.xpose.msra.mxu0 %v193
    %476 = vmatprep.subr.mxu0 %v196
    %477 = vmatpush1.xpose.msra.mxu0 %v195
    %478 = vmatprep.subr.mxu0 %v198
    %479 = vmatpush1.xpose.msra.mxu0 %v197
    %480 = vmatprep.subr.mxu0 %v200
    %481 = vmatpush1.xpose.msra.mxu0 %v199
    %482 = vmatprep.subr.mxu0 %v202
    %483 = vmatpush1.xpose.msra.mxu0 %v201
    %484 = vmatprep.subr.mxu0 %v204
    %485 = vmatpush1.xpose.msra.mxu0 %v203
    %486 = vmatprep.subr.mxu0 %v206
    %487 = vmatpush1.xpose.msra.mxu0 %v205
    %488 = vmatprep.subr.mxu0 %v208
    %489 = vmatpush1.xpose.msra.mxu0 %v207
    %490 = vmatprep.subr.mxu0 %v210
    %491 = vmatpush1.xpose.msra.mxu0 %v209
    %492 = vmatprep.subr.mxu0 %v212
    %493 = vmatpush1.xpose.msra.mxu0 %v211
    %494 = vmatprep.subr.mxu0 %v214
    %495 = vmatpush1.xpose.msra.mxu0 %v213
    %496 = vmatprep.subr.mxu0 %v216
    %497 = vmatpush1.xpose.msra.mxu0 %v215
    %498 = vmatprep.subr.mxu0 %v218
    %499 = vmatpush1.xpose.msra.mxu0 %v217
    %500 = vmatprep.mubr.f32.mxu0 %v291
    %501 = vmatmul.mubr.f32.gmra.mrb[0].mxu0 %v287
    %v502 = vpop.f32.mrb[0].mxu0
    %v503 = vadd.f32 0.0, %v502
    %v504 = vpop.f32.mrb[0].mxu0
    %v505 = vadd.f32 0.0, %v504
    %506 = vdwg.mxu0
    %507 = vmatprep.subr.mxu0 %v220
    %508 = vmatpush1.xpose.msra.mxu0 %v219
    %509 = vmatprep.subr.mxu0 %v222
    %510 = vmatpush1.xpose.msra.mxu0 %v221
    %511 = vmatprep.subr.mxu0 %v224
    %512 = vmatpush1.xpose.msra.mxu0 %v223
    %513 = vmatprep.subr.mxu0 %v226
    %514 = vmatpush1.xpose.msra.mxu0 %v225
    %515 = vmatprep.subr.mxu0 %v228
    %516 = vmatpush1.xpose.msra.mxu0 %v227
    %517 = vmatprep.subr.mxu0 %v230
    %518 = vmatpush1.xpose.msra.mxu0 %v229
    %519 = vmatprep.subr.mxu0 %v232
    %520 = vmatpush1.xpose.msra.mxu0 %v231
    %521 = vmatprep.subr.mxu0 %v234
    %522 = vmatpush1.xpose.msra.mxu0 %v233
    %523 = vmatprep.subr.mxu0 %v236
    %524 = vmatpush1.xpose.msra.mxu0 %v235
    %525 = vmatprep.subr.mxu0 %v238
    %526 = vmatpush1.xpose.msra.mxu0 %v237
    %527 = vmatprep.subr.mxu0 %v240
    %528 = vmatpush1.xpose.msra.mxu0 %v239
    %529 = vmatprep.subr.mxu0 %v242
    %530 = vmatpush1.xpose.msra.mxu0 %v241
    %531 = vmatprep.subr.mxu0 %v244
    %532 = vmatpush1.xpose.msra.mxu0 %v243
    %533 = vmatprep.subr.mxu0 %v246
    %534 = vmatpush1.xpose.msra.mxu0 %v245
    %535 = vmatprep.subr.mxu0 %v248
    %536 = vmatpush1.xpose.msra.mxu0 %v247
    %537 = vmatprep.subr.mxu0 %v250
    %538 = vmatpush1.xpose.msra.mxu0 %v249
    %539 = vmatprep.subr.mxu0 %v252
    %540 = vmatpush1.xpose.msra.mxu0 %v251
    %541 = vmatprep.subr.mxu0 %v254
    %542 = vmatpush1.xpose.msra.mxu0 %v253
    %543 = vmatprep.subr.mxu0 %v256
    %544 = vmatpush1.xpose.msra.mxu0 %v255
    %545 = vmatprep.subr.mxu0 %v258
    %546 = vmatpush1.xpose.msra.mxu0 %v257
    %547 = vmatprep.subr.mxu0 %v260
    %548 = vmatpush1.xpose.msra.mxu0 %v259
    %549 = vmatprep.subr.mxu0 %v262
    %550 = vmatpush1.xpose.msra.mxu0 %v261
    %551 = vmatprep.subr.mxu0 %v264
    %552 = vmatpush1.xpose.msra.mxu0 %v263
    %553 = vmatprep.subr.mxu0 %v266
    %554 = vmatpush1.xpose.msra.mxu0 %v265
    %555 = vmatprep.subr.mxu0 %v268
    %556 = vmatpush1.xpose.msra.mxu0 %v267
    %557 = vmatprep.subr.mxu0 %v270
    %558 = vmatpush1.xpose.msra.mxu0 %v269
    %559 = vmatprep.subr.mxu0 %v272
    %560 = vmatpush1.xpose.msra.mxu0 %v271
    %561 = vmatprep.subr.mxu0 %v274
    %562 = vmatpush1.xpose.msra.mxu0 %v273
    %563 = vmatprep.subr.mxu0 %v276
    %564 = vmatpush1.xpose.msra.mxu0 %v275
    %565 = vmatprep.subr.mxu0 %v278
    %566 = vmatpush1.xpose.msra.mxu0 %v277
    %567 = vmatprep.subr.mxu0 %v280
    %568 = vmatpush1.xpose.msra.mxu0 %v279
    %569 = vmatprep.subr.mxu0 %v282
    %570 = vmatpush1.xpose.msra.mxu0 %v281
    %571 = vmatprep.mubr.f32.mxu0 %v291
    %572 = vmatmul.mubr.f32.gmra.mrb[0].mxu0 %v287
    %v573 = vpop.f32.mrb[0].mxu0
    %v574 = vadd.f32 0.0, %v573
    %v575 = vpop.f32.mrb[0].mxu0
    %v576 = vadd.f32 0.0, %v575
    %577 = vdwg.mxu0
    %v586 = vcombine.low %v361, %v363
    %v587 = vcombine.low %v432, %v434
    %v588 = vcombine.low %v503, %v505
    %v589 = vcombine.low %v574, %v576
    %v591 = vunpack.c.l.s4 1966171168
    %v592 = vunpack.c.0.s8 %v591
    %v593 = vlaneseq
    %v594 = vshrl.u32 %v593, 7
    %v595 = vsub.s32 %v592, %v594
    %v596 = vrot.slane %v586, %v595
    %v598 = vunpack.c.l.s4 1966171168
    %v599 = vunpack.c.0.s8 %v598
    %v600 = vlaneseq
    %v601 = vshrl.u32 %v600, 7
    %v602 = vsub.s32 %v599, %v601
    %v603 = vrot.slane %v587, %v602
    %v605 = vunpack.c.l.s4 1966171168
    %v606 = vunpack.c.0.s8 %v605
    %v607 = vlaneseq
    %v608 = vshrl.u32 %v607, 7
    %v609 = vsub.s32 %v606, %v608
    %v610 = vrot.slane %v588, %v609
    %v612 = vunpack.c.l.s4 1966171168
    %v613 = vunpack.c.0.s8 %v612
    %v614 = vlaneseq
    %v615 = vshrl.u32 %v614, 7
    %v616 = vsub.s32 %v613, %v615
    %v617 = vrot.slane %v589, %v616
    %v618 = vcombine.low %v596, %v603
    %v619 = vcombine.low %v610, %v617
    %v621 = vunpack.c.l.s4 1966171168
    %v622 = vunpack.c.0.s8 %v621
    %v623 = vlaneseq
    %v624 = vshrl.u32 %v623, 7
    %v625 = vsub.s32 %v622, %v624
    %v626 = vrot.slane %v618, %v625
    %v628 = vunpack.c.l.s4 1966171168
    %v629 = vunpack.c.0.s8 %v628
    %v630 = vlaneseq
    %v631 = vshrl.u32 %v630, 7
    %v632 = vsub.s32 %v629, %v631
    %v633 = vrot.slane %v619, %v632
    %v634 = vcombine.low %v626, %v633
    %636 = vst [vmem:[#allocation5] sm:$0xff] %v634
    // Predicated region
    $region14: #{tpu_custom_call.1} parent=1 // pred_check
      _
    $region15: #{tpu_custom_call.1} parent=1 // pred_check_branch
      %638 = sbr.rel (0) target = $region17
    $region16: #{tpu_custom_call.1} parent=1 // pred_region
      %s640 = ssub.s32 128, 128
      %641 = vsyncadd [#allocation4], %s640
      %s643 = sshll.u32 [#allocation5], 4
      %s644 = int_to_ptr.vmem [resolvable:$true] %s643
      %646 = dma.vmem_to_hbm [thread:$0]  %s644, 128, %s2, [#allocation4]
    $region17: #{tpu_custom_call.1} parent=1 // pred_fallthru
      _
    // Predicated region
    $region18: #{tpu_custom_call.1} parent=1 // pred_check
      _
    $region19: #{tpu_custom_call.1} parent=1 // pred_check_branch
      %648 = sbr.rel (0) target = $region21
    $region20: #{tpu_custom_call.1} parent=1 // pred_region
      %649 = dma.done [#allocation4], 128
    $region21: #{tpu_custom_call.1} parent=1 // pred_fallthru
      _
    %650 = vsyncpa [#allocation3], 1
    %651 = vsyncpa [#allocation4], 1

</llo_original>
